<compile_context>
chip_gen: v7x
topology: tpu7x:2x2x1
jax: 0.10.0
libtpu: 0.0.40
codegen_flags: <defaults>
</compile_context>

<pallas_src>
import jax
import jax.numpy as jnp
from jax.experimental import pallas as pl
from jax.experimental.pallas import tpu as pltpu


def _round_up(n, m):
    return ((n + m - 1) // m) * m


def _mlp_kernel(xt_ref, w1_ref, b1_ref, w2_ref, b2_ref, w3_ref, b3_ref, o_ref):
    # xt_ref: (13, TILE_B) f32, batch on the lane axis.  Matmuls accumulate in f32
    # on the MXU; bias-add + ReLU epilogue runs in the bias dtype (bf16 on v6e/v7x,
    # f32 on v5e).
    xt = xt_ref[...]

    # fc1 + relu: (64, 13) @ (13, TILE_B) -> (64, TILE_B).
    h1 = jnp.dot(w1_ref[...], xt, preferred_element_type=jnp.float32)
    h1 = jnp.maximum(h1.astype(b1_ref.dtype) + b1_ref[...], 0)

    # fc2 + relu: (32, 64) @ (64, TILE_B) -> (32, TILE_B).
    h2 = jnp.dot(w2_ref[...], h1, preferred_element_type=jnp.float32)
    h2 = jnp.maximum(h2.astype(b2_ref.dtype) + b2_ref[...], 0)

    # fc3 (no activation): (1, 32) @ (32, TILE_B) -> (1, TILE_B), lane-dense store.
    out = jnp.dot(w3_ref[...], h2, preferred_element_type=jnp.float32)
    o_ref[...] = out + b3_ref[0, 0]


def _choose_tile(batch, tile_cap, n_shards=2):
    """Lane-aligned batch tile.  Caps the tile (VMEM / pipelining) while keeping
    n_tiles >= 2 when the batch allows, so the parallel grid axis can be split
    across v7x's two TensorCores; extra steps are negligible on single-TC chips."""
    b_min = _round_up(batch, 128)
    cap = max(128, _round_up(int(tile_cap), 128))
    if b_min <= cap * n_shards:
        tile = min(cap, max(128, _round_up(pl.cdiv(b_min, n_shards), 128)))
    else:
        k = pl.cdiv(b_min, cap * n_shards)
        tile = min(cap, _round_up(pl.cdiv(b_min, k * n_shards), 128))
    b_pad = _round_up(batch, tile)
    return tile, b_pad


def boston_housing_forward(x, params, *, tile_b=16384):
    """x: (B, 13) float32.  params: PyTorch-layout weights (out, in) and biases
    (out, 1).  Returns (B, 1) float32, matching BostonHousingModel.forward()."""
    B = x.shape[0]
    tile, b_pad = _choose_tile(B, tile_b)
    n_tiles = b_pad // tile

    # bf16 epilogue / hidden activations only where the VPU has native bf16
    # (v6e / v7x); keep the f32 epilogue on v5e and older generations.
    kind = jax.devices()[0].device_kind.lower()
    act_dtype = (jnp.float32 if any(v in kind for v in ("v2", "v3", "v4", "v5"))
                 else jnp.bfloat16)

    # x^T, zero-padded along the batch (lane) axis.  Kept in f32: fc1's K=13 makes
    # the f32 matmul essentially free and avoids bf16 error on raw features.
    # allow_input_fusion below permits XLA to fuse this transpose/pad into the
    # pallas_call operand DMA.
    xt = x.T
    if b_pad != B:
        xt = jnp.pad(xt, ((0, 0), (0, b_pad - B)))

    w1 = params["w1"].astype(jnp.float32)   # (64, 13)
    w2 = params["w2"].astype(act_dtype)     # (32, 64)
    w3 = params["w3"].astype(act_dtype)     # (1, 32)
    b1 = params["b1"].astype(act_dtype)     # (64, 1)
    b2 = params["b2"].astype(act_dtype)     # (32, 1)
    b3 = params["b3"].astype(jnp.float32)   # (1, 1) scalar -> SMEM

    # Whole-array blocks with a constant index_map -> DMA'd once, VMEM-resident
    # across all batch tiles.
    resident = lambda a: pl.BlockSpec(a.shape, lambda i: (0, 0))

    out_t = pl.pallas_call(
        _mlp_kernel,
        out_shape=jax.ShapeDtypeStruct((1, b_pad), jnp.float32),
        grid_spec=pl.GridSpec(
            grid=(n_tiles,),
            in_specs=[
                pl.BlockSpec((13, tile), lambda i: (0, i)),          # x^T streams over batch
                resident(w1), resident(b1),
                resident(w2), resident(b2),
                resident(w3),
                pl.BlockSpec(memory_space=pltpu.MemorySpace.SMEM),   # b3 scalar in SMEM
            ],
            out_specs=pl.BlockSpec((1, tile), lambda i: (0, i)),     # lane-dense output
        ),
        compiler_params=pltpu.CompilerParams(
            dimension_semantics=("parallel",),
            allow_input_fusion=[True, False, False, False, False, False, False],
        ),
    )(xt, w1, b1, w2, b2, w3, b3)

    # (1, b_pad) -> (B, 1).  Padded batch columns carry ReLU(bias) garbage and must
    # be dropped here.
    return out_t[0, :B].reshape(B, 1)


def init_params(key):
    """PyTorch nn.Linear-style init (uniform +/- 1/sqrt(fan_in)).
    Weights stored as (out_features, in_features), biases as (out_features, 1)."""
    dims = [(13, 64), (64, 32), (32, 1)]
    params = {}
    for i, (fan_in, fan_out) in enumerate(dims, start=1):
        key, kw, kb = jax.random.split(key, 3)
        bound = 1.0 / jnp.sqrt(fan_in)
        params[f"w{i}"] = jax.random.uniform(
            kw, (fan_out, fan_in), jnp.float32, minval=-bound, maxval=bound)
        params[f"b{i}"] = jax.random.uniform(
            kb, (fan_out, 1), jnp.float32, minval=-bound, maxval=bound)
    return params


def _reference_forward(x, p):
    # Pure-JAX f32 reference in PyTorch orientation.
    h1 = jnp.maximum(x @ p["w1"].T + p["b1"].T, 0.0)
    h2 = jnp.maximum(h1 @ p["w2"].T + p["b2"].T, 0.0)
    return h2 @ p["w3"].T + p["b3"].T


if __name__ == "__main__":
    key = jax.random.PRNGKey(0)
    key, kx, kp = jax.random.split(key, 3)

    batch = 8
    x = jax.random.normal(kx, (batch, 13), jnp.float32)
    params = init_params(kp)

    out = boston_housing_forward(x, params)
    out = jax.block_until_ready(out)

    ref = _reference_forward(x, params)
    assert out.shape == (batch, 1), out.shape
    # bf16 hidden activations on v6e/v7x => loosened tolerance vs the f32 reference.
    assert jnp.allclose(out, ref, atol=5e-2, rtol=5e-2), (
        "mismatch vs reference", jnp.max(jnp.abs(out - ref)))

    print("KERNEL_OK")
</pallas_src>

<mosaic_0001>
module attributes {stable_mosaic.version = 11 : i64} {
  func.func @_mlp_kernel(%arg0: i32, %arg1: memref<13x128xf32, #tpu.memory_space<vmem>>, %arg2: memref<64x13xf32, #tpu.memory_space<vmem>>, %arg3: memref<64x1xbf16, #tpu.memory_space<vmem>>, %arg4: memref<32x64xbf16, #tpu.memory_space<vmem>>, %arg5: memref<32x1xbf16, #tpu.memory_space<vmem>>, %arg6: memref<1x32xbf16, #tpu.memory_space<vmem>>, %arg7: memref<1x1xf32, #tpu.memory_space<smem>>, %arg8: memref<1x128xf32, #tpu.memory_space<vmem>>) attributes {dimension_semantics = [#tpu.dimension_semantics<parallel>], iteration_bounds = array<i64: 1>, scalar_prefetch = 0 : i64, scratch_operands = 0 : i64, tpu.core_type = #tpu.core_type<tc>, window_params = [{transform_indices = @transform_0, window_bounds = array<i64: 13, 128>}, {pipeline_mode = #tpu.pipeline_mode<synchronous>, transform_indices = @transform_1, window_bounds = array<i64: 64, 13>}, {pipeline_mode = #tpu.pipeline_mode<synchronous>, transform_indices = @transform_2, window_bounds = array<i64: 64, 1>}, {pipeline_mode = #tpu.pipeline_mode<synchronous>, transform_indices = @transform_3, window_bounds = array<i64: 32, 64>}, {pipeline_mode = #tpu.pipeline_mode<synchronous>, transform_indices = @transform_4, window_bounds = array<i64: 32, 1>}, {pipeline_mode = #tpu.pipeline_mode<synchronous>, transform_indices = @transform_5, window_bounds = array<i64: 1, 32>}, {transform_indices = @transform_6, window_bounds = array<i64: 1, 1>}, {transform_indices = @transform_7, window_bounds = array<i64: 1, 128>}]} {
    %c0 = arith.constant 0 : index
    %c0_0 = arith.constant 0 : index
    %0 = vector.load %arg1[%c0, %c0_0] : memref<13x128xf32, #tpu.memory_space<vmem>>, vector<13x128xf32>
    %c0_1 = arith.constant 0 : index
    %c0_2 = arith.constant 0 : index
    %1 = vector.load %arg2[%c0_1, %c0_2] : memref<64x13xf32, #tpu.memory_space<vmem>>, vector<64x13xf32>
    %cst = arith.constant dense<0.000000e+00> : vector<64x128xf32>
    %2 = tpu.matmul %1, %0, %cst {dimension_numbers = #tpu.dot_dimension_numbers<[1], [0], [0], [1], [0, 0, 1, 1], [], []>} : vector<64x13xf32>, vector<13x128xf32>, vector<64x128xf32> -> vector<64x128xf32>
    %3 = arith.truncf %2 : vector<64x128xf32> to vector<64x128xbf16>
    %c0_3 = arith.constant 0 : index
    %c0_4 = arith.constant 0 : index
    %4 = vector.load %arg3[%c0_3, %c0_4] : memref<64x1xbf16, #tpu.memory_space<vmem>>, vector<64x1xbf16>
    %5 = vector.broadcast %4 : vector<64x1xbf16> to vector<64x128xbf16>
    %6 = arith.addf %3, %5 : vector<64x128xbf16>
    %cst_5 = arith.constant 0.000000e+00 : bf16
    %7 = vector.broadcast %cst_5 : bf16 to vector<64x128xbf16>
    %8 = arith.maximumf %6, %7 : vector<64x128xbf16>
    %c0_6 = arith.constant 0 : index
    %c0_7 = arith.constant 0 : index
    %9 = vector.load %arg4[%c0_6, %c0_7] : memref<32x64xbf16, #tpu.memory_space<vmem>>, vector<32x64xbf16>
    %cst_8 = arith.constant dense<0.000000e+00> : vector<32x128xf32>
    %10 = tpu.matmul %9, %8, %cst_8 {dimension_numbers = #tpu.dot_dimension_numbers<[1], [0], [0], [1], [0, 0, 1, 1], [], []>} : vector<32x64xbf16>, vector<64x128xbf16>, vector<32x128xf32> -> vector<32x128xf32>
    %11 = arith.truncf %10 : vector<32x128xf32> to vector<32x128xbf16>
    %c0_9 = arith.constant 0 : index
    %c0_10 = arith.constant 0 : index
    %12 = vector.load %arg5[%c0_9, %c0_10] : memref<32x1xbf16, #tpu.memory_space<vmem>>, vector<32x1xbf16>
    %13 = vector.broadcast %12 : vector<32x1xbf16> to vector<32x128xbf16>
    %14 = arith.addf %11, %13 : vector<32x128xbf16>
    %cst_11 = arith.constant 0.000000e+00 : bf16
    %15 = vector.broadcast %cst_11 : bf16 to vector<32x128xbf16>
    %16 = arith.maximumf %14, %15 : vector<32x128xbf16>
    %c0_12 = arith.constant 0 : index
    %c0_13 = arith.constant 0 : index
    %17 = vector.load %arg6[%c0_12, %c0_13] : memref<1x32xbf16, #tpu.memory_space<vmem>>, vector<1x32xbf16>
    %cst_14 = arith.constant dense<0.000000e+00> : vector<1x128xf32>
    %18 = tpu.matmul %17, %16, %cst_14 {dimension_numbers = #tpu.dot_dimension_numbers<[1], [0], [0], [1], [0, 0, 1, 1], [], []>} : vector<1x32xbf16>, vector<32x128xbf16>, vector<1x128xf32> -> vector<1x128xf32>
    %c0_15 = arith.constant 0 : index
    %c0_16 = arith.constant 0 : index
    %19 = memref.load %arg7[%c0_15, %c0_16] : memref<1x1xf32, #tpu.memory_space<smem>>
    %20 = vector.broadcast %19 : f32 to vector<1x128xf32>
    %21 = arith.addf %18, %20 : vector<1x128xf32>
    %c0_17 = arith.constant 0 : index
    %c0_18 = arith.constant 0 : index
    %22 = vector.load %arg8[%c0_17, %c0_18] : memref<1x128xf32, #tpu.memory_space<vmem>>, vector<1x128xf32>
    tpu.vector_store %arg8[%c0_17, %c0_18], %21 {strides = array<i32>} : memref<1x128xf32, #tpu.memory_space<vmem>>, vector<1x128xf32>,
    return
  }
  func.func @transform_0(%arg0: i32) -> (i32, i32) {
    %c0_i32 = arith.constant 0 : i32
    %c0_i32_0 = arith.constant 0 : i32
    return %c0_i32, %arg0 : i32, i32
  }
  func.func @transform_1(%arg0: i32) -> (i32, i32) {
    %c0_i32 = arith.constant 0 : i32
    %c0_i32_0 = arith.constant 0 : i32
    %c0_i32_1 = arith.constant 0 : i32
    return %c0_i32, %c0_i32_0 : i32, i32
  }
  func.func @transform_2(%arg0: i32) -> (i32, i32) {
    %c0_i32 = arith.constant 0 : i32
    %c0_i32_0 = arith.constant 0 : i32
    %c0_i32_1 = arith.constant 0 : i32
    return %c0_i32, %c0_i32_0 : i32, i32
  }
  func.func @transform_3(%arg0: i32) -> (i32, i32) {
    %c0_i32 = arith.constant 0 : i32
    %c0_i32_0 = arith.constant 0 : i32
    %c0_i32_1 = arith.constant 0 : i32
    return %c0_i32, %c0_i32_0 : i32, i32
  }
  func.func @transform_4(%arg0: i32) -> (i32, i32) {
    %c0_i32 = arith.constant 0 : i32
    %c0_i32_0 = arith.constant 0 : i32
    %c0_i32_1 = arith.constant 0 : i32
    return %c0_i32, %c0_i32_0 : i32, i32
  }
  func.func @transform_5(%arg0: i32) -> (i32, i32) {
    %c0_i32 = arith.constant 0 : i32
    %c0_i32_0 = arith.constant 0 : i32
    %c0_i32_1 = arith.constant 0 : i32
    return %c0_i32, %c0_i32_0 : i32, i32
  }
  func.func @transform_6(%arg0: i32) -> (i32, i32) {
    %c0_i32 = arith.constant 0 : i32
    %c0_i32_0 = arith.constant 0 : i32
    %c0_i32_1 = arith.constant 0 : i32
    return %c0_i32, %c0_i32_0 : i32, i32
  }
  func.func @transform_7(%arg0: i32) -> (i32, i32) {
    %c0_i32 = arith.constant 0 : i32
    %c0_i32_0 = arith.constant 0 : i32
    return %c0_i32, %arg0 : i32, i32
  }
}

</mosaic_0001>

<llo_original>
// kernel: tpu_custom_call.1
$region0: #{tpu_custom_call.1}
  #allocation0 [shape = 'u32[]', space=smem, size = 0x4, offset = 0x4, fixed_abs, tag = 'smem constant byte address 0x4 - core index']
  #allocation1 [shape = 'u32[144,128]{1,0:T(1,128)}', space=vmem, size = 0x12000, scoped, tag = 'internal scratch']
  #allocation2 [shape = 'f32[1,1]{1,0:T(1,128)S(6)}', space=smem, size = 0x200, scoped, tag = 'scoped memory for tpu_custom_call.1']
  %s0 = inlined_call_operand.vmem [shape: f32[13,128], index: 0, kind: input, shape index: {}]
  %s1 = inlined_call_operand.vmem [shape: f32[64,13], index: 1, kind: input, shape index: {}]
  %s2 = inlined_call_operand.vmem [shape: bf16[64,1], index: 2, kind: input, shape index: {}]
  %s3 = inlined_call_operand.vmem [shape: bf16[32,64], index: 3, kind: input, shape index: {}]
  %s4 = inlined_call_operand.vmem [shape: bf16[32,1], index: 4, kind: input, shape index: {}]
  %s5 = inlined_call_operand.vmem [shape: bf16[1,32], index: 5, kind: input, shape index: {}]
  %s6 = inlined_call_operand.<no memory space> [shape: f32[1,1], index: 6, kind: input, shape index: {}]
  %s7 = inlined_call_operand.hbm [shape: f32[1,128], index: 7, kind: output, shape index: {}]
  %s8 = sld [smem:[#allocation0]]
  $region38: #{tpu_custom_call.1} parent=0
    _
  %s10 = ssub.s32 1, %s8
  %s11 = scalar_select 0, %s10, %s8
  %12 = sst [smem:[#allocation2]] %s6
  $region1: #{tpu_custom_call.1} parent=0
    #allocation3 [shape = 'u8[512]{0}', space=vmem, size = 0x400, scoped, tag = 'output window, operand 0, single buffered']
    #allocation4 [shape = 's32[1]{0}', space=sflag, size = 0x4, scoped, tag = 'scoped memory for tpu_custom_call.1']
    %13 = vsyncpa [#allocation4], 0
    // Predicated region
    $region2: #{tpu_custom_call.1} parent=1 // pred_check
      _
    $region3: #{tpu_custom_call.1} parent=1 // pred_check_branch
      %15 = sbr.rel (0) target = $region5
    $region4: #{tpu_custom_call.1} parent=1 // pred_region
      _
    $region5: #{tpu_custom_call.1} parent=1 // pred_fallthru
      _
    // Predicated region
    $region6: #{tpu_custom_call.1} parent=1 // pred_check
      _
    $region7: #{tpu_custom_call.1} parent=1 // pred_check_branch
      %17 = sbr.rel (0) target = $region9
    $region8: #{tpu_custom_call.1} parent=1 // pred_region
      _
    $region9: #{tpu_custom_call.1} parent=1 // pred_fallthru
      _
    // Predicated region
    $region10: #{tpu_custom_call.1} parent=1 // pred_check
      _
    $region11: #{tpu_custom_call.1} parent=1 // pred_check_branch
      %19 = sbr.rel (0) target = $region13
    $region12: #{tpu_custom_call.1} parent=1 // pred_region
      _
    $region13: #{tpu_custom_call.1} parent=1 // pred_fallthru
      _
    // Predicated region
    $region14: #{tpu_custom_call.1} parent=1 // pred_check
      _
    $region15: #{tpu_custom_call.1} parent=1 // pred_check_branch
      %21 = sbr.rel (0) target = $region17
    $region16: #{tpu_custom_call.1} parent=1 // pred_region
      _
    $region17: #{tpu_custom_call.1} parent=1 // pred_fallthru
      _
    // Predicated region
    $region18: #{tpu_custom_call.1} parent=1 // pred_check
      _
    $region19: #{tpu_custom_call.1} parent=1 // pred_check_branch
      %23 = sbr.rel (0) target = $region21
    $region20: #{tpu_custom_call.1} parent=1 // pred_region
      _
    $region21: #{tpu_custom_call.1} parent=1 // pred_fallthru
      _
    // Predicated region
    $region22: #{tpu_custom_call.1} parent=1 // pred_check
      _
    $region23: #{tpu_custom_call.1} parent=1 // pred_check_branch
      %25 = sbr.rel (0) target = $region25
    $region24: #{tpu_custom_call.1} parent=1 // pred_region
      _
    $region25: #{tpu_custom_call.1} parent=1 // pred_fallthru
      _
    // Predicated region
    $region26: #{tpu_custom_call.1} parent=1 // pred_check
      _
    $region27: #{tpu_custom_call.1} parent=1 // pred_check_branch
      %27 = sbr.rel (0) target = $region29
    $region28: #{tpu_custom_call.1} parent=1 // pred_region
      _
    $region29: #{tpu_custom_call.1} parent=1 // pred_fallthru
      _
    %v29 = vld [vmem:[%s0] sm:$0xff]
    %v30 = vld [vmem:[%s0 + $0x8] sm:$0x1f]
    %v31 = vld [vmem:[%s1] sm:$0xff]
    %v32 = vld [vmem:[%s1 + $0x8] sm:$0xff]
    %v33 = vld [vmem:[%s1 + $0x10] sm:$0xff]
    %v34 = vld [vmem:[%s1 + $0x18] sm:$0xff]
    %v35 = vld [vmem:[%s1 + $0x20] sm:$0xff]
    %v36 = vld [vmem:[%s1 + $0x28] sm:$0xff]
    %v37 = vld [vmem:[%s1 + $0x30] sm:$0xff]
    %v38 = vld [vmem:[%s1 + $0x38] sm:$0xff]
    %vm39 = vcmask 105472
    %v41 = vsel %vm39, %v31, 0
    %v44 = vsel %vm39, %v32, 0
    %v47 = vsel %vm39, %v33, 0
    %v50 = vsel %vm39, %v34, 0
    %v53 = vsel %vm39, %v35, 0
    %v56 = vsel %vm39, %v36, 0
    %v59 = vsel %vm39, %v37, 0
    %v62 = vsel %vm39, %v38, 0
    %vm64 = vcmask 1044480
    %v66 = vsel %vm64, %v30, 0
    %68 = vmatprep.subr.mxu0 0.0
    %69 = vmatpush1.msra.mxu0 %v29
    %70 = vmatprep.subr.mxu0 0.0
    %71 = vmatpush1.msra.mxu0 %v66
    %72 = vmatprep.subr.mxu0 0.0
    %73 = vmatpush1.msra.mxu0 0.0
    %74 = vmatprep.subr.mxu0 0.0
    %75 = vmatpush1.msra.mxu0 0.0
    %76 = vmatprep.subr.mxu0 0.0
    %77 = vmatpush1.msra.mxu0 0.0
    %78 = vmatprep.subr.mxu0 0.0
    %79 = vmatpush1.msra.mxu0 0.0
    %80 = vmatprep.subr.mxu0 0.0
    %81 = vmatpush1.msra.mxu0 0.0
    %82 = vmatprep.subr.mxu0 0.0
    %83 = vmatpush1.msra.mxu0 0.0
    %84 = vmatprep.subr.mxu0 0.0
    %85 = vmatpush1.msra.mxu0 0.0
    %86 = vmatprep.subr.mxu0 0.0
    %87 = vmatpush1.msra.mxu0 0.0
    %88 = vmatprep.subr.mxu0 0.0
    %89 = vmatpush1.msra.mxu0 0.0
    %90 = vmatprep.subr.mxu0 0.0
    %91 = vmatpush1.msra.mxu0 0.0
    %92 = vmatprep.subr.mxu0 0.0
    %93 = vmatpush1.msra.mxu0 0.0
    %94 = vmatprep.subr.mxu0 0.0
    %95 = vmatpush1.msra.mxu0 0.0
    %96 = vmatprep.subr.mxu0 0.0
    %97 = vmatpush1.msra.mxu0 0.0
    %98 = vmatprep.subr.mxu0 0.0
    %99 = vmatpush1.msra.mxu0 0.0
    %100 = vmatprep.subr.mxu0 0.0
    %101 = vmatpush1.msra.mxu0 0.0
    %102 = vmatprep.subr.mxu0 0.0
    %103 = vmatpush1.msra.mxu0 0.0
    %104 = vmatprep.subr.mxu0 0.0
    %105 = vmatpush1.msra.mxu0 0.0
    %106 = vmatprep.subr.mxu0 0.0
    %107 = vmatpush1.msra.mxu0 0.0
    %108 = vmatprep.subr.mxu0 0.0
    %109 = vmatpush1.msra.mxu0 0.0
    %110 = vmatprep.subr.mxu0 0.0
    %111 = vmatpush1.msra.mxu0 0.0
    %112 = vmatprep.subr.mxu0 0.0
    %113 = vmatpush1.msra.mxu0 0.0
    %114 = vmatprep.subr.mxu0 0.0
    %115 = vmatpush1.msra.mxu0 0.0
    %116 = vmatprep.subr.mxu0 0.0
    %117 = vmatpush1.msra.mxu0 0.0
    %118 = vmatprep.subr.mxu0 0.0
    %119 = vmatpush1.msra.mxu0 0.0
    %120 = vmatprep.subr.mxu0 0.0
    %121 = vmatpush1.msra.mxu0 0.0
    %122 = vmatprep.subr.mxu0 0.0
    %123 = vmatpush1.msra.mxu0 0.0
    %124 = vmatprep.subr.mxu0 0.0
    %125 = vmatpush1.msra.mxu0 0.0
    %126 = vmatprep.subr.mxu0 0.0
    %127 = vmatpush1.msra.mxu0 0.0
    %128 = vmatprep.subr.mxu0 0.0
    %129 = vmatpush1.msra.mxu0 0.0
    %130 = vmatprep.subr.mxu0 0.0
    %131 = vmatpush1.msra.mxu0 0.0
    %132 = vmatprep.mubr.f32.mxu0 0.0
    %133 = vmatmul.mubr.f32.gmra.mrb[0].mxu0 %v41
    %v134 = vpop.f32.mrb[0].mxu0
    %v135 = vadd.f32 0.0, %v134
    %v136 = vpop.f32.mrb[0].mxu0
    %137 = vmatprep.mubr.f32.mxu0 0.0
    %138 = vmatmul.mubr.f32.gmra.mrb[0].mxu0 %v44
    %v139 = vpop.f32.mrb[0].mxu0
    %v140 = vadd.f32 0.0, %v139
    %v141 = vpop.f32.mrb[0].mxu0
    %142 = vmatprep.mubr.f32.mxu0 0.0
    %143 = vmatmul.mubr.f32.gmra.mrb[0].mxu0 %v47
    %v144 = vpop.f32.mrb[0].mxu0
    %v145 = vadd.f32 0.0, %v144
    %v146 = vpop.f32.mrb[0].mxu0
    %147 = vmatprep.mubr.f32.mxu0 0.0
    %148 = vmatmul.mubr.f32.gmra.mrb[0].mxu0 %v50
    %v149 = vpop.f32.mrb[0].mxu0
    %v150 = vadd.f32 0.0, %v149
    %v151 = vpop.f32.mrb[0].mxu0
    %152 = vmatprep.mubr.f32.mxu0 0.0
    %153 = vmatmul.mubr.f32.gmra.mrb[0].mxu0 %v53
    %v154 = vpop.f32.mrb[0].mxu0
    %v155 = vadd.f32 0.0, %v154
    %v156 = vpop.f32.mrb[0].mxu0
    %157 = vmatprep.mubr.f32.mxu0 0.0
    %158 = vmatmul.mubr.f32.gmra.mrb[0].mxu0 %v56
    %v159 = vpop.f32.mrb[0].mxu0
    %v160 = vadd.f32 0.0, %v159
    %v161 = vpop.f32.mrb[0].mxu0
    %162 = vmatprep.mubr.f32.mxu0 0.0
    %163 = vmatmul.mubr.f32.gmra.mrb[0].mxu0 %v59
    %v164 = vpop.f32.mrb[0].mxu0
    %v165 = vadd.f32 0.0, %v164
    %v166 = vpop.f32.mrb[0].mxu0
    %167 = vmatprep.mubr.f32.mxu0 0.0
    %168 = vmatmul.mubr.f32.gmra.mrb[0].mxu0 %v62
    %v169 = vpop.f32.mrb[0].mxu0
    %v170 = vadd.f32 0.0, %v169
    %v171 = vpop.f32.mrb[0].mxu0
    %172 = vdwg.mxu0
    %v173 = vpack.c.bf16 %v140, %v135
    %v174 = vpack.c.bf16 %v150, %v145
    %v175 = vpack.c.bf16 %v160, %v155
    %v176 = vpack.c.bf16 %v170, %v165
    %v177 = vld [vmem:[%s2] sm:$0xf]
    %v178 = vld [vmem:[%s2 + $0x4] sm:$0xf]
    %v179 = vld [vmem:[%s2 + $0x8] sm:$0xf]
    %v180 = vld [vmem:[%s2 + $0xc] sm:$0xf]
    %v181 = vld [vmem:[%s2 + $0x10] sm:$0xf]
    %v182 = vld [vmem:[%s2 + $0x14] sm:$0xf]
    %v183 = vld [vmem:[%s2 + $0x18] sm:$0xf]
    %v184 = vld [vmem:[%s2 + $0x1c] sm:$0xf]
    %186 = vset.pattern.permute.xlu0 0
    %187 = vperm.xlu0 %186, %v177
    %v188 = vpop.permute.xlu0 %187
    %v191 = vunpack.c.l.s4 839922192
    %v192 = vunpack.c.0.s8 %v191
    %v193 = vlaneseq
    %v194 = vshrl.u32 %v193, 7
    %v195 = vsub.s32 %v192, %v194
    %v196 = vrot.slane %v188, %v195
    %198 = vset.pattern.permute.xlu0 0
    %199 = vperm.xlu0 %198, %v178
    %v200 = vpop.permute.xlu0 %199
    %v203 = vunpack.c.l.s4 839922192
    %v204 = vunpack.c.0.s8 %v203
    %v205 = vlaneseq
    %v206 = vshrl.u32 %v205, 7
    %v207 = vsub.s32 %v204, %v206
    %v208 = vrot.slane %v200, %v207
    %210 = vset.pattern.permute.xlu0 0
    %211 = vperm.xlu0 %210, %v179
    %v212 = vpop.permute.xlu0 %211
    %v215 = vunpack.c.l.s4 839922192
    %v216 = vunpack.c.0.s8 %v215
    %v217 = vlaneseq
    %v218 = vshrl.u32 %v217, 7
    %v219 = vsub.s32 %v216, %v218
    %v220 = vrot.slane %v212, %v219
    %222 = vset.pattern.permute.xlu0 0
    %223 = vperm.xlu0 %222, %v180
    %v224 = vpop.permute.xlu0 %223
    %v227 = vunpack.c.l.s4 839922192
    %v228 = vunpack.c.0.s8 %v227
    %v229 = vlaneseq
    %v230 = vshrl.u32 %v229, 7
    %v231 = vsub.s32 %v228, %v230
    %v232 = vrot.slane %v224, %v231
    %234 = vset.pattern.permute.xlu0 0
    %235 = vperm.xlu0 %234, %v181
    %v236 = vpop.permute.xlu0 %235
    %v239 = vunpack.c.l.s4 839922192
    %v240 = vunpack.c.0.s8 %v239
    %v241 = vlaneseq
    %v242 = vshrl.u32 %v241, 7
    %v243 = vsub.s32 %v240, %v242
    %v244 = vrot.slane %v236, %v243
    %246 = vset.pattern.permute.xlu0 0
    %247 = vperm.xlu0 %246, %v182
    %v248 = vpop.permute.xlu0 %247
    %v251 = vunpack.c.l.s4 839922192
    %v252 = vunpack.c.0.s8 %v251
    %v253 = vlaneseq
    %v254 = vshrl.u32 %v253, 7
    %v255 = vsub.s32 %v252, %v254
    %v256 = vrot.slane %v248, %v255
    %258 = vset.pattern.permute.xlu0 0
    %259 = vperm.xlu0 %258, %v183
    %v260 = vpop.permute.xlu0 %259
    %v263 = vunpack.c.l.s4 839922192
    %v264 = vunpack.c.0.s8 %v263
    %v265 = vlaneseq
    %v266 = vshrl.u32 %v265, 7
    %v267 = vsub.s32 %v264, %v266
    %v268 = vrot.slane %v260, %v267
    %270 = vset.pattern.permute.xlu0 0
    %271 = vperm.xlu0 %270, %v184
    %v272 = vpop.permute.xlu0 %271
    %v275 = vunpack.c.l.s4 839922192
    %v276 = vunpack.c.0.s8 %v275
    %v277 = vlaneseq
    %v278 = vshrl.u32 %v277, 7
    %v279 = vsub.s32 %v276, %v278
    %v280 = vrot.slane %v272, %v279
    %v289 = vunpack.c.l.b16 %v196
    %v290 = vunpack.c.l.b16 %v208
    %v291 = vunpack.c.l.b16 %v220
    %v292 = vunpack.c.l.b16 %v232
    %v293 = vunpack.c.l.b16 %v244
    %v294 = vunpack.c.l.b16 %v256
    %v295 = vunpack.c.l.b16 %v268
    %v296 = vunpack.c.l.b16 %v280
    %v297 = vpack.c.b16 %v290, %v289
    %v298 = vpack.c.b16 %v292, %v291
    %v299 = vpack.c.b16 %v294, %v293
    %v300 = vpack.c.b16 %v296, %v295
    %v305 = vadd.bf16 %v173, %v297
    %v306 = vadd.bf16 %v174, %v298
    %v307 = vadd.bf16 %v175, %v299
    %v308 = vadd.bf16 %v176, %v300
    %v309 = vmax.bf16 %v305, 0
    %v310 = vmax.bf16 %v306, 0
    %v311 = vmax.bf16 %v307, 0
    %v312 = vmax.bf16 %v308, 0
    %v313 = vld [vmem:[%s3] sm:$0xf]
    %v314 = vld [vmem:[%s3 + $0x4] sm:$0xf]
    %v315 = vld [vmem:[%s3 + $0x8] sm:$0xf]
    %v316 = vld [vmem:[%s3 + $0xc] sm:$0xf]
    %v321 = vunpack.c.l.b16 %v313
    %v322 = vunpack.c.l.b16 %v314
    %v323 = vunpack.c.l.b16 %v315
    %v324 = vunpack.c.l.b16 %v316
    %v325 = vpack.c.b16 %v322, %v321
    %v326 = vpack.c.b16 %v324, %v323
    %vm327 = vcmask 523264
    %v329 = vsel %vm327, %v325, 0
    %v332 = vsel %vm327, %v326, 0
    %334 = vmatprep.subr.bf16.mxu0 0
    %335 = vmatpush1.bf16.msra.mxu0 %v309
    %336 = vmatprep.subr.bf16.mxu0 0
    %337 = vmatpush1.bf16.msra.mxu0 %v310
    %338 = vmatprep.subr.bf16.mxu0 0
    %339 = vmatpush1.bf16.msra.mxu0 %v311
    %340 = vmatprep.subr.bf16.mxu0 0
    %341 = vmatpush1.bf16.msra.mxu0 %v312
    %342 = vmatprep.subr.bf16.mxu0 0
    %343 = vmatpush1.bf16.msra.mxu0 0
    %344 = vmatprep.subr.bf16.mxu0 0
    %345 = vmatpush1.bf16.msra.mxu0 0
    %346 = vmatprep.subr.bf16.mxu0 0
    %347 = vmatpush1.bf16.msra.mxu0 0
    %348 = vmatprep.subr.bf16.mxu0 0
    %349 = vmatpush1.bf16.msra.mxu0 0
    %350 = vmatprep.subr.bf16.mxu0 0
    %351 = vmatpush1.bf16.msra.mxu0 0
    %352 = vmatprep.subr.bf16.mxu0 0
    %353 = vmatpush1.bf16.msra.mxu0 0
    %354 = vmatprep.subr.bf16.mxu0 0
    %355 = vmatpush1.bf16.msra.mxu0 0
    %356 = vmatprep.subr.bf16.mxu0 0
    %357 = vmatpush1.bf16.msra.mxu0 0
    %358 = vmatprep.subr.bf16.mxu0 0
    %359 = vmatpush1.bf16.msra.mxu0 0
    %360 = vmatprep.subr.bf16.mxu0 0
    %361 = vmatpush1.bf16.msra.mxu0 0
    %362 = vmatprep.subr.bf16.mxu0 0
    %363 = vmatpush1.bf16.msra.mxu0 0
    %364 = vmatprep.subr.bf16.mxu0 0
    %365 = vmatpush1.bf16.msra.mxu0 0
    %366 = vmatprep.mubr.bf16.mxu0 0
    %367 = vmatmul.mubr.bf16.gmra.mrb[0].mxu0 %v329
    %v368 = vpop.f32.mrb[0].mxu0
    %v369 = vadd.f32 0.0, %v368
    %v370 = vpop.f32.mrb[0].mxu0
    %v371 = vpop.f32.mrb[0].mxu0
    %v372 = vadd.f32 0.0, %v371
    %v373 = vpop.f32.mrb[0].mxu0
    %374 = vmatprep.mubr.bf16.mxu0 0
    %375 = vmatmul.mubr.bf16.gmra.mrb[0].mxu0 %v332
    %v376 = vpop.f32.mrb[0].mxu0
    %v377 = vadd.f32 0.0, %v376
    %v378 = vpop.f32.mrb[0].mxu0
    %v379 = vpop.f32.mrb[0].mxu0
    %v380 = vadd.f32 0.0, %v379
    %v381 = vpop.f32.mrb[0].mxu0
    %382 = vdwg.mxu0
    %v383 = vpack.c.bf16 %v372, %v369
    %v384 = vpack.c.bf16 %v380, %v377
    %v385 = vld [vmem:[%s4] sm:$0xf]
    %v386 = vld [vmem:[%s4 + $0x4] sm:$0xf]
    %v387 = vld [vmem:[%s4 + $0x8] sm:$0xf]
    %v388 = vld [vmem:[%s4 + $0xc] sm:$0xf]
    %390 = vset.pattern.permute.xlu0 0
    %391 = vperm.xlu0 %390, %v385
    %v392 = vpop.permute.xlu0 %391
    %v395 = vunpack.c.l.s4 839922192
    %v396 = vunpack.c.0.s8 %v395
    %v397 = vlaneseq
    %v398 = vshrl.u32 %v397, 7
    %v399 = vsub.s32 %v396, %v398
    %v400 = vrot.slane %v392, %v399
    %402 = vset.pattern.permute.xlu0 0
    %403 = vperm.xlu0 %402, %v386
    %v404 = vpop.permute.xlu0 %403
    %v407 = vunpack.c.l.s4 839922192
    %v408 = vunpack.c.0.s8 %v407
    %v409 = vlaneseq
    %v410 = vshrl.u32 %v409, 7
    %v411 = vsub.s32 %v408, %v410
    %v412 = vrot.slane %v404, %v411
    %414 = vset.pattern.permute.xlu0 0
    %415 = vperm.xlu0 %414, %v387
    %v416 = vpop.permute.xlu0 %415
    %v419 = vunpack.c.l.s4 839922192
    %v420 = vunpack.c.0.s8 %v419
    %v421 = vlaneseq
    %v422 = vshrl.u32 %v421, 7
    %v423 = vsub.s32 %v420, %v422
    %v424 = vrot.slane %v416, %v423
    %426 = vset.pattern.permute.xlu0 0
    %427 = vperm.xlu0 %426, %v388
    %v428 = vpop.permute.xlu0 %427
    %v431 = vunpack.c.l.s4 839922192
    %v432 = vunpack.c.0.s8 %v431
    %v433 = vlaneseq
    %v434 = vshrl.u32 %v433, 7
    %v435 = vsub.s32 %v432, %v434
    %v436 = vrot.slane %v428, %v435
    %v441 = vunpack.c.l.b16 %v400
    %v442 = vunpack.c.l.b16 %v412
    %v443 = vunpack.c.l.b16 %v424
    %v444 = vunpack.c.l.b16 %v436
    %v445 = vpack.c.b16 %v442, %v441
    %v446 = vpack.c.b16 %v444, %v443
    %v449 = vadd.bf16 %v383, %v445
    %v450 = vadd.bf16 %v384, %v446
    %v451 = vmax.bf16 %v449, 0
    %v452 = vmax.bf16 %v450, 0
    %v453 = vld [vmem:[%s5] sm:$0x1]
    %s454 = sld [smem:[#allocation2]]
    %v455 = vstv %s454
    %vm456 = vcmask 261120
    %v458 = vsel %vm456, %v453, 0
    %460 = vmatprep.subr.bf16.mxu0 0
    %461 = vmatpush1.bf16.msra.mxu0 %v451
    %462 = vmatprep.subr.bf16.mxu0 0
    %463 = vmatpush1.bf16.msra.mxu0 %v452
    %464 = vmatprep.subr.bf16.mxu0 0
    %465 = vmatpush1.bf16.msra.mxu0 0
    %466 = vmatprep.subr.bf16.mxu0 0
    %467 = vmatpush1.bf16.msra.mxu0 0
    %468 = vmatprep.subr.bf16.mxu0 0
    %469 = vmatpush1.bf16.msra.mxu0 0
    %470 = vmatprep.subr.bf16.mxu0 0
    %471 = vmatpush1.bf16.msra.mxu0 0
    %472 = vmatprep.subr.bf16.mxu0 0
    %473 = vmatpush1.bf16.msra.mxu0 0
    %474 = vmatprep.subr.bf16.mxu0 0
    %475 = vmatpush1.bf16.msra.mxu0 0
    %476 = vmatprep.subr.bf16.mxu0 0
    %477 = vmatpush1.bf16.msra.mxu0 0
    %478 = vmatprep.subr.bf16.mxu0 0
    %479 = vmatpush1.bf16.msra.mxu0 0
    %480 = vmatprep.subr.bf16.mxu0 0
    %481 = vmatpush1.bf16.msra.mxu0 0
    %482 = vmatprep.subr.bf16.mxu0 0
    %483 = vmatpush1.bf16.msra.mxu0 0
    %484 = vmatprep.subr.bf16.mxu0 0
    %485 = vmatpush1.bf16.msra.mxu0 0
    %486 = vmatprep.subr.bf16.mxu0 0
    %487 = vmatpush1.bf16.msra.mxu0 0
    %488 = vmatprep.subr.bf16.mxu0 0
    %489 = vmatpush1.bf16.msra.mxu0 0
    %490 = vmatprep.subr.bf16.mxu0 0
    %491 = vmatpush1.bf16.msra.mxu0 0
    %492 = vmatprep.mubr.bf16.mxu0 0
    %493 = vmatmul.mubr.bf16.gmra.mrb[0].mxu0 %v458
    %v494 = vpop.f32.mrb[0].mxu0
    %v495 = vadd.f32 %v455, %v494
    %v496 = vpop.f32.mrb[0].mxu0
    %v497 = vpop.f32.mrb[0].mxu0
    %v498 = vpop.f32.mrb[0].mxu0
    %499 = vdwg.mxu0
    %500 = vst [vmem:[#allocation3] sm:$0x1] %v495
    // Predicated region
    $region30: #{tpu_custom_call.1} parent=1 // pred_check
      _
    $region31: #{tpu_custom_call.1} parent=1 // pred_check_branch
      %502 = sbr.rel (0) target = $region33
    $region32: #{tpu_custom_call.1} parent=1 // pred_region
      %s504 = ssub.s32 16, 16
      %505 = vsyncadd [#allocation4], %s504
      %s507 = sshll.u32 [#allocation3], 4
      %s508 = int_to_ptr.vmem [resolvable:$true] %s507
      %510 = dma.vmem_to_hbm [thread:$0]  %s508, 16, %s7, [#allocation4]
    $region33: #{tpu_custom_call.1} parent=1 // pred_fallthru
      _
    // Predicated region
    $region34: #{tpu_custom_call.1} parent=1 // pred_check
      _
    $region35: #{tpu_custom_call.1} parent=1 // pred_check_branch
      %512 = sbr.rel (0) target = $region37
    $region36: #{tpu_custom_call.1} parent=1 // pred_region
      %513 = dma.done [#allocation4], 16
    $region37: #{tpu_custom_call.1} parent=1 // pred_fallthru
      _
    %514 = vsyncpa [#allocation4], 1

</llo_original>
